<compile_context>
chip_gen: v5e
topology: v5e:2x2
jax: 0.10.0
libtpu: 0.0.40
codegen_flags: <defaults>
</compile_context>

<pallas_src>
import functools

import jax
import jax.numpy as jnp
from jax.experimental import pallas as pl
from jax.experimental.pallas import tpu as pltpu


def _res2_kernel(x_ref, w_ref, b_ref, g_ref, bt_ref, m_ref, out_ref, sp_ref, *,
                 kernel_size, dilation, padding, inv_count, eps):
    """One Res2Net split per grid step.

    x_ref  : (W, N)   f32   channel-major input chunk i, N = B * T_pad lanes
    w_ref  : (W, K*W) bf16  im2col-folded conv weights of split i
    b_ref  : (W, 1)   f32   conv bias
    g_ref  : (W, 1)   f32   BN gamma
    bt_ref : (W, 1)   f32   BN beta
    m_ref  : (1, N)   f32   1.0 where the lane is a real (b, t < T) sample
    out_ref: (W, N)   f32   output chunk i
    sp_ref : (W, N)   f32   running `sp`, persists across grid steps
    """
    i = pl.program_id(0)

    @pl.when(i == 0)
    def _():
        sp_ref[...] = x_ref[...]

    @pl.when(i != 0)
    def _():
        sp_ref[...] = sp_ref[...] + x_ref[...]

    sp = sp_ref[...]                                      # (W, N) f32
    n = sp.shape[1]

    # im2col: tap k reads time index t + k*dilation - padding.  Shifts use XLU
    # rotations (slot idle while MXU/VPU work); any wrapped lanes only touch
    # the zero-padded T margin, never real data of another batch element.
    cols = []
    for k in range(kernel_size):
        shift = (padding - k * dilation) % n
        cols.append(sp if shift == 0 else pltpu.roll(sp, shift=shift, axis=1))
    xcol = cols[0] if kernel_size == 1 else jnp.concatenate(cols, axis=0)
    xcol = xcol.astype(jnp.bfloat16)                      # (K*W, N)

    # Single bf16 MXU matmul per split: (W, K*W) @ (K*W, N) -> (W, N) f32.
    acc = jnp.dot(w_ref[...], xcol, preferred_element_type=jnp.float32)
    acc = acc + b_ref[...]

    # ReLU then BatchNorm1d (batch statistics over (B, T), biased variance),
    # one-pass sum / sum-of-squares, padded lanes excluded via the mask.
    r = jnp.maximum(acc, 0.0)
    mask = m_ref[...]                                     # (1, N)
    rm = r * mask
    s1 = jnp.sum(rm, axis=1, keepdims=True)               # (W, 1)
    s2 = jnp.sum(rm * rm, axis=1, keepdims=True)          # (W, 1)
    mean = s1 * inv_count
    var = s2 * inv_count - mean * mean
    y = (r - mean) * jax.lax.rsqrt(var + eps)
    y = (y * g_ref[...] + bt_ref[...]) * mask             # zero the T padding

    out_ref[...] = y.astype(out_ref.dtype)
    sp_ref[...] = y                                       # feeds split i + 1


def res2conv1d_relu_bn(x, w, b, gamma, beta, *, kernel_size, stride, padding,
                       dilation, scale, eps=1e-5):
    B, C, T = x.shape
    assert C % scale == 0, f"{C} % {scale} != 0"
    W = C // scale
    nums = scale if scale == 1 else scale - 1
    K, d, p = kernel_size, dilation, padding

    assert stride == 1, "residual structure requires stride == 1"
    T_out = (T + 2 * p - d * (K - 1) - 1) // stride + 1
    assert T_out == T, "conv must preserve T (use padding = dilation*(K-1)//2)"
    assert W % 8 == 0 or nums == 1, "width must be a multiple of 8 (sublanes)"
    # TODO(synk): v7x dual-TensorCore batch split with CMEM-reduced BN stats.

    # Lane layout: fold (B, T) onto lanes; pad T so (a) the lane dim is a
    # multiple of 128 and (b) circular rolls never leak real data across
    # batch-segment boundaries (margin >= max left/right conv reach).
    margin = max(p, (K - 1) * d - p, 0)
    Tp = ((T + margin + 127) // 128) * 128
    N = B * Tp
    Cu = nums * W

    xk = jnp.pad(x[:, :Cu, :], ((0, 0), (0, 0), (0, Tp - T)))
    xk = jnp.transpose(xk, (1, 0, 2)).reshape(Cu, N).astype(jnp.float32)

    # Conv weights (nums, W_out, W_in, K) -> (nums, W_out, K*W_in), bf16,
    # k-major along the folded contraction to match the kernel's im2col stack.
    wk = jnp.transpose(w, (0, 1, 3, 2)).reshape(nums, W, K * W)
    wk = wk.astype(jnp.bfloat16)
    bk = b.reshape(nums, W, 1).astype(jnp.float32)
    gk = gamma.reshape(nums, W, 1).astype(jnp.float32)
    btk = beta.reshape(nums, W, 1).astype(jnp.float32)

    # Valid-sample lane mask (1, B*Tp): 1.0 where t < T inside each segment.
    valid_t = (jnp.arange(Tp) < T).astype(jnp.float32)
    mask = jnp.broadcast_to(valid_t[None, :], (B, Tp)).reshape(1, N)

    kernel = functools.partial(
        _res2_kernel, kernel_size=K, dilation=d, padding=p,
        inv_count=1.0 / float(B * T), eps=float(eps))

    # Scoped-VMEM sizing: double-buffered blocks + scratch + intermediates.
    est = (5 * W * N * 4 + 2 * W * K * W * 2 + 6 * W * 4 + 2 * N * 4
           + (K + 2) * W * N * 4)
    vmem_limit = int(min(max(4 * est, 32 * 1024 * 1024), 64 * 1024 * 1024))

    out_flat = pl.pallas_call(
        kernel,
        out_shape=jax.ShapeDtypeStruct((Cu, N), jnp.float32),
        grid_spec=pltpu.PrefetchScalarGridSpec(
            num_scalar_prefetch=0,
            grid=(nums,),
            in_specs=[
                pl.BlockSpec((W, N), lambda i: (i, 0)),               # x chunk
                pl.BlockSpec((None, W, K * W), lambda i: (i, 0, 0)),  # weights
                pl.BlockSpec((None, W, 1), lambda i: (i, 0, 0)),      # bias
                pl.BlockSpec((None, W, 1), lambda i: (i, 0, 0)),      # gamma
                pl.BlockSpec((None, W, 1), lambda i: (i, 0, 0)),      # beta
                pl.BlockSpec((1, N), lambda i: (0, 0)),               # mask
            ],
            out_specs=pl.BlockSpec((W, N), lambda i: (i, 0)),
            scratch_shapes=[pltpu.VMEM((W, N), jnp.float32)],         # sp carry
        ),
        compiler_params=pltpu.CompilerParams(
            dimension_semantics=("arbitrary",),   # sp dependency -> sequential
            vmem_limit_bytes=vmem_limit),
    )(xk, wk, bk, gk, btk, mask)

    y = out_flat.reshape(Cu, B, Tp)[:, :, :T]             # drop lane padding
    y = jnp.transpose(y, (1, 0, 2))                       # (B, Cu, T)
    if Cu < C:
        y = jnp.concatenate([y, x[:, Cu:, :]], axis=1)    # untouched last split
    return y


def reference(x, w, b, gamma, beta, *, kernel_size, stride, padding, dilation,
              scale, eps=1e-5):
    """Pure-JAX f32 reference mirroring the PyTorch forward."""
    B, C, T = x.shape
    width = C // scale
    nums = scale if scale == 1 else scale - 1
    outs = []
    sp = None
    for i in range(nums):
        chunk = x[:, i * width:(i + 1) * width, :]
        sp = chunk if i == 0 else sp + chunk
        y = jax.lax.conv_general_dilated(
            sp, w[i], window_strides=(stride,), padding=[(padding, padding)],
            rhs_dilation=(dilation,), dimension_numbers=('NCH', 'OIH', 'NCH'))
        y = y + b[i][None, :, None]
        r = jnp.maximum(y, 0.0)
        mean = r.mean(axis=(0, 2), keepdims=True)
        var = ((r - mean) ** 2).mean(axis=(0, 2), keepdims=True)
        y = (r - mean) * jax.lax.rsqrt(var + eps)
        y = y * gamma[i][None, :, None] + beta[i][None, :, None]
        outs.append(y)
        sp = y
    if scale != 1:
        outs.append(x[:, nums * width:, :])
    return jnp.concatenate(outs, axis=1)


if __name__ == "__main__":
    # ECAPA-style small config: channels=32, kernel_size=3, padding=1,
    # dilation=1, stride=1, bias=True, scale=4  ->  width=8, nums=3.
    B, C, T = 2, 32, 16
    scale, K, stride, padding, dilation = 4, 3, 1, 1, 1
    width = C // scale
    nums = scale - 1

    key = jax.random.PRNGKey(0)
    kx, kw, kb, kg, kbeta = jax.random.split(key, 5)
    x = jax.random.normal(kx, (B, C, T), jnp.float32)
    w = jax.random.normal(kw, (nums, width, width, K), jnp.float32) * 0.3
    b = jax.random.normal(kb, (nums, width), jnp.float32) * 0.1
    gamma = 1.0 + 0.1 * jax.random.normal(kg, (nums, width), jnp.float32)
    beta = 0.1 * jax.random.normal(kbeta, (nums, width), jnp.float32)

    out = res2conv1d_relu_bn(x, w, b, gamma, beta, kernel_size=K,
                             stride=stride, padding=padding,
                             dilation=dilation, scale=scale)
    out = jax.block_until_ready(out)

    ref = reference(x, w, b, gamma, beta, kernel_size=K, stride=stride,
                    padding=padding, dilation=dilation, scale=scale)
    assert out.shape == (B, C, T)
    # Kernel runs the conv on the bf16 MXU path (f32 accumulation / BN math),
    # so compare against the f32 reference with a bf16-level tolerance.
    assert jnp.allclose(out, ref, rtol=5e-2, atol=5e-2), "mismatch vs reference"

    print("KERNEL_OK")
</pallas_src>

<mosaic_0001>
module attributes {stable_mosaic.version = 11 : i64} {
  func.func @_res2_kernel(%arg0: i32, %arg1: memref<8x256xf32, #tpu.memory_space<vmem>>, %arg2: memref<1x8x24xbf16, #tpu.memory_space<vmem>>, %arg3: memref<1x8x1xf32, #tpu.memory_space<vmem>>, %arg4: memref<1x8x1xf32, #tpu.memory_space<vmem>>, %arg5: memref<1x8x1xf32, #tpu.memory_space<vmem>>, %arg6: memref<1x256xf32, #tpu.memory_space<vmem>>, %arg7: memref<8x256xf32, #tpu.memory_space<vmem>>, %arg8: memref<8x256xf32, #tpu.memory_space<vmem>>) attributes {dimension_semantics = [#tpu.dimension_semantics<arbitrary>], iteration_bounds = array<i64: 3>, scalar_prefetch = 0 : i64, scratch_operands = 1 : i64, tpu.core_type = #tpu.core_type<tc>, window_params = [{transform_indices = @transform_0, window_bounds = array<i64: 8, 256>}, {transform_indices = @transform_1, window_bounds = array<i64: 1, 8, 24>}, {transform_indices = @transform_2, window_bounds = array<i64: 1, 8, 1>}, {transform_indices = @transform_3, window_bounds = array<i64: 1, 8, 1>}, {transform_indices = @transform_4, window_bounds = array<i64: 1, 8, 1>}, {pipeline_mode = #tpu.pipeline_mode<synchronous>, transform_indices = @transform_5, window_bounds = array<i64: 1, 256>}, {transform_indices = @transform_6, window_bounds = array<i64: 8, 256>}]} {
    %c0_i32 = arith.constant 0 : i32
    %0 = arith.cmpi eq, %arg0, %c0_i32 : i32
    %1 = arith.extui %0 : i1 to i32
    %c0_i32_0 = arith.constant 0 : i32
    %2 = arith.cmpi ne, %1, %c0_i32_0 : i32
    scf.if %2 {
      %c0_28 = arith.constant 0 : index
      %c0_29 = arith.constant 0 : index
      %53 = vector.load %arg1[%c0_28, %c0_29] : memref<8x256xf32, #tpu.memory_space<vmem>>, vector<8x256xf32>
      %c0_30 = arith.constant 0 : index
      %c0_31 = arith.constant 0 : index
      %54 = vector.load %arg8[%c0_30, %c0_31] : memref<8x256xf32, #tpu.memory_space<vmem>>, vector<8x256xf32>
      tpu.vector_store %arg8[%c0_30, %c0_31], %53 {strides = array<i32>} : memref<8x256xf32, #tpu.memory_space<vmem>>, vector<8x256xf32>,
    } else {
    }
    %c0_i32_1 = arith.constant 0 : i32
    %3 = arith.cmpi ne, %arg0, %c0_i32_1 : i32
    %4 = arith.extui %3 : i1 to i32
    %c0_i32_2 = arith.constant 0 : i32
    %5 = arith.cmpi ne, %4, %c0_i32_2 : i32
    scf.if %5 {
      %c0_28 = arith.constant 0 : index
      %c0_29 = arith.constant 0 : index
      %53 = vector.load %arg8[%c0_28, %c0_29] : memref<8x256xf32, #tpu.memory_space<vmem>>, vector<8x256xf32>
      %c0_30 = arith.constant 0 : index
      %c0_31 = arith.constant 0 : index
      %54 = vector.load %arg1[%c0_30, %c0_31] : memref<8x256xf32, #tpu.memory_space<vmem>>, vector<8x256xf32>
      %55 = arith.addf %53, %54 : vector<8x256xf32>
      %c0_32 = arith.constant 0 : index
      %c0_33 = arith.constant 0 : index
      %56 = vector.load %arg8[%c0_32, %c0_33] : memref<8x256xf32, #tpu.memory_space<vmem>>, vector<8x256xf32>
      tpu.vector_store %arg8[%c0_32, %c0_33], %55 {strides = array<i32>} : memref<8x256xf32, #tpu.memory_space<vmem>>, vector<8x256xf32>,
    } else {
    }
    %c0 = arith.constant 0 : index
    %c0_3 = arith.constant 0 : index
    %6 = vector.load %arg8[%c0, %c0_3] : memref<8x256xf32, #tpu.memory_space<vmem>>, vector<8x256xf32>
    %c1_i32 = arith.constant 1 : i32
    %7 = tpu.dynamic_rotate %6 by %c1_i32 dim 1 : vector<8x256xf32>, i32 -> vector<8x256xf32>
    %c255_i32 = arith.constant 255 : i32
    %8 = tpu.dynamic_rotate %6 by %c255_i32 dim 1 : vector<8x256xf32>, i32 -> vector<8x256xf32>
    %9 = tpu.concatenate %7, %6, %8 in 0 : vector<8x256xf32>, vector<8x256xf32>, vector<8x256xf32> -> vector<24x256xf32>
    %10 = arith.truncf %9 : vector<24x256xf32> to vector<24x256xbf16>
    %c0_4 = arith.constant 0 : index
    %c0_5 = arith.constant 0 : index
    %c0_6 = arith.constant 0 : index
    %11 = vector.load %arg2[%c0_4, %c0_5, %c0_6] : memref<1x8x24xbf16, #tpu.memory_space<vmem>>, vector<1x8x24xbf16>
    %12 = vector.shape_cast %11 : vector<1x8x24xbf16> to vector<8x24xbf16>
    %cst = arith.constant dense<0.000000e+00> : vector<8x256xf32>
    %13 = tpu.matmul %12, %10, %cst {dimension_numbers = #tpu.dot_dimension_numbers<[1], [0], [0], [1], [0, 0, 1, 1], [], []>} : vector<8x24xbf16>, vector<24x256xbf16>, vector<8x256xf32> -> vector<8x256xf32>
    %c0_7 = arith.constant 0 : index
    %c0_8 = arith.constant 0 : index
    %c0_9 = arith.constant 0 : index
    %14 = vector.load %arg3[%c0_7, %c0_8, %c0_9] : memref<1x8x1xf32, #tpu.memory_space<vmem>>, vector<1x8x1xf32>
    %15 = vector.shape_cast %14 : vector<1x8x1xf32> to vector<8x1xf32>
    %16 = vector.broadcast %15 : vector<8x1xf32> to vector<8x256xf32>
    %17 = arith.addf %13, %16 : vector<8x256xf32>
    %cst_10 = arith.constant 0.000000e+00 : f32
    %18 = vector.broadcast %cst_10 : f32 to vector<8x256xf32>
    %19 = arith.maximumf %17, %18 : vector<8x256xf32>
    %c0_11 = arith.constant 0 : index
    %c0_12 = arith.constant 0 : index
    %20 = vector.load %arg6[%c0_11, %c0_12] : memref<1x256xf32, #tpu.memory_space<vmem>>, vector<1x256xf32>
    %21 = vector.broadcast %20 : vector<1x256xf32> to vector<8x256xf32>
    %22 = arith.mulf %19, %21 : vector<8x256xf32>
    %cst_13 = arith.constant dense<0.000000e+00> : vector<8xf32>
    %23 = vector.multi_reduction <add>, %22, %cst_13 [1] : vector<8x256xf32> to vector<8xf32>
    %24 = vector.shape_cast %23 : vector<8xf32> to vector<8x1xf32>
    %25 = arith.mulf %22, %22 : vector<8x256xf32>
    %cst_14 = arith.constant dense<0.000000e+00> : vector<8xf32>
    %26 = vector.multi_reduction <add>, %25, %cst_14 [1] : vector<8x256xf32> to vector<8xf32>
    %27 = vector.shape_cast %26 : vector<8xf32> to vector<8x1xf32>
    %cst_15 = arith.constant 3.125000e-02 : f32
    %28 = vector.broadcast %cst_15 : f32 to vector<8x1xf32>
    %29 = arith.mulf %24, %28 : vector<8x1xf32>
    %cst_16 = arith.constant 3.125000e-02 : f32
    %30 = vector.broadcast %cst_16 : f32 to vector<8x1xf32>
    %31 = arith.mulf %27, %30 : vector<8x1xf32>
    %32 = arith.mulf %29, %29 : vector<8x1xf32>
    %33 = arith.subf %31, %32 : vector<8x1xf32>
    %34 = vector.broadcast %29 : vector<8x1xf32> to vector<8x256xf32>
    %35 = arith.subf %19, %34 : vector<8x256xf32>
    %cst_17 = arith.constant 9.99999974E-6 : f32
    %36 = vector.broadcast %cst_17 : f32 to vector<8x1xf32>
    %37 = arith.addf %33, %36 : vector<8x1xf32>
    %38 = math.rsqrt %37 : vector<8x1xf32>
    %39 = vector.broadcast %38 : vector<8x1xf32> to vector<8x256xf32>
    %40 = arith.mulf %35, %39 : vector<8x256xf32>
    %c0_18 = arith.constant 0 : index
    %c0_19 = arith.constant 0 : index
    %c0_20 = arith.constant 0 : index
    %41 = vector.load %arg4[%c0_18, %c0_19, %c0_20] : memref<1x8x1xf32, #tpu.memory_space<vmem>>, vector<1x8x1xf32>
    %42 = vector.shape_cast %41 : vector<1x8x1xf32> to vector<8x1xf32>
    %43 = vector.broadcast %42 : vector<8x1xf32> to vector<8x256xf32>
    %44 = arith.mulf %40, %43 : vector<8x256xf32>
    %c0_21 = arith.constant 0 : index
    %c0_22 = arith.constant 0 : index
    %c0_23 = arith.constant 0 : index
    %45 = vector.load %arg5[%c0_21, %c0_22, %c0_23] : memref<1x8x1xf32, #tpu.memory_space<vmem>>, vector<1x8x1xf32>
    %46 = vector.shape_cast %45 : vector<1x8x1xf32> to vector<8x1xf32>
    %47 = vector.broadcast %46 : vector<8x1xf32> to vector<8x256xf32>
    %48 = arith.addf %44, %47 : vector<8x256xf32>
    %49 = vector.broadcast %20 : vector<1x256xf32> to vector<8x256xf32>
    %50 = arith.mulf %48, %49 : vector<8x256xf32>
    %c0_24 = arith.constant 0 : index
    %c0_25 = arith.constant 0 : index
    %51 = vector.load %arg7[%c0_24, %c0_25] : memref<8x256xf32, #tpu.memory_space<vmem>>, vector<8x256xf32>
    tpu.vector_store %arg7[%c0_24, %c0_25], %50 {strides = array<i32>} : memref<8x256xf32, #tpu.memory_space<vmem>>, vector<8x256xf32>,
    %c0_26 = arith.constant 0 : index
    %c0_27 = arith.constant 0 : index
    %52 = vector.load %arg8[%c0_26, %c0_27] : memref<8x256xf32, #tpu.memory_space<vmem>>, vector<8x256xf32>
    tpu.vector_store %arg8[%c0_26, %c0_27], %50 {strides = array<i32>} : memref<8x256xf32, #tpu.memory_space<vmem>>, vector<8x256xf32>,
    return
  }
  func.func @transform_0(%arg0: i32) -> (i32, i32) {
    %c0_i32 = arith.constant 0 : i32
    %c0_i32_0 = arith.constant 0 : i32
    return %arg0, %c0_i32 : i32, i32
  }
  func.func @transform_1(%arg0: i32) -> (i32, i32, i32) {
    %c0_i32 = arith.constant 0 : i32
    %c0_i32_0 = arith.constant 0 : i32
    %c0_i32_1 = arith.constant 0 : i32
    return %arg0, %c0_i32, %c0_i32_0 : i32, i32, i32
  }
  func.func @transform_2(%arg0: i32) -> (i32, i32, i32) {
    %c0_i32 = arith.constant 0 : i32
    %c0_i32_0 = arith.constant 0 : i32
    %c0_i32_1 = arith.constant 0 : i32
    return %arg0, %c0_i32, %c0_i32_0 : i32, i32, i32
  }
  func.func @transform_3(%arg0: i32) -> (i32, i32, i32) {
    %c0_i32 = arith.constant 0 : i32
    %c0_i32_0 = arith.constant 0 : i32
    %c0_i32_1 = arith.constant 0 : i32
    return %arg0, %c0_i32, %c0_i32_0 : i32, i32, i32
  }
  func.func @transform_4(%arg0: i32) -> (i32, i32, i32) {
    %c0_i32 = arith.constant 0 : i32
    %c0_i32_0 = arith.constant 0 : i32
    %c0_i32_1 = arith.constant 0 : i32
    return %arg0, %c0_i32, %c0_i32_0 : i32, i32, i32
  }
  func.func @transform_5(%arg0: i32) -> (i32, i32) {
    %c0_i32 = arith.constant 0 : i32
    %c0_i32_0 = arith.constant 0 : i32
    %c0_i32_1 = arith.constant 0 : i32
    return %c0_i32, %c0_i32_0 : i32, i32
  }
  func.func @transform_6(%arg0: i32) -> (i32, i32) {
    %c0_i32 = arith.constant 0 : i32
    %c0_i32_0 = arith.constant 0 : i32
    return %arg0, %c0_i32 : i32, i32
  }
}

</mosaic_0001>

<llo_original>
// kernel: tpu_custom_call.1
$region0: #{tpu_custom_call.1}
  #allocation0 [shape = 'u32[]', space=smem, size = 0x4, offset = 0x4, fixed_abs, tag = 'smem constant byte address 0x4 - core index']
  #allocation1 [shape = 'u32[72,128]{1,0:T(1,128)}', space=vmem, size = 0x9000, scoped, tag = 'internal scratch']
  #allocation2 [shape = 'f32[8,256]{1,0:T(8,128)}', space=vmem, size = 0x2000, scoped, tag = 'scratch operand']
  %s0 = inlined_call_operand.vmem [shape: f32[24,256], index: 0, kind: input, shape index: {}]
  %s1 = inlined_call_operand.vmem [shape: bf16[3,8,24], index: 1, kind: input, shape index: {}]
  %s2 = inlined_call_operand.vmem [shape: f32[3,8,1], index: 2, kind: input, shape index: {}]
  %s3 = inlined_call_operand.vmem [shape: f32[3,8,1], index: 3, kind: input, shape index: {}]
  %s4 = inlined_call_operand.vmem [shape: f32[3,8,1], index: 4, kind: input, shape index: {}]
  %s5 = inlined_call_operand.vmem [shape: f32[1,256], index: 5, kind: input, shape index: {}]
  %s6 = inlined_call_operand.hbm [shape: f32[24,256], index: 6, kind: output, shape index: {}]
  %s7 = sld [smem:[#allocation0]]
  $region65: #{tpu_custom_call.1} parent=0
    _
  %s9 = ssub.s32 1, %s7
  %s10 = scalar_select 0, %s9, %s7
  $region1: #{tpu_custom_call.1} parent=0
    #allocation3 [shape = 'u8[16384]{0}', space=vmem, size = 0x4000, scoped, tag = 'output window, operand 0']
    #allocation4 [shape = 's32[2]{0}', space=sflag, size = 0x8, scoped, tag = 'scoped memory for tpu_custom_call.1']
    %11 = vsyncpa [#allocation4], 0
    %s12 = scalar_lea.sflag [#allocation4], 1
    %13 = vsyncpa %s12, 0
    loop: start=0, step=1, limit=5
    $region2: #{tpu_custom_call.1} parent=1 // loop_pre_header
      _
    $region3: #{tpu_custom_call.1} parent=1 // loop_header
      %s15 = sphi 0, %s19
      %p16 = scmp.ge.s32.totalorder %s15, 5
      %s25 = sphi 0, %s27
      %s28 = sphi 0, %s25
      %s29 = sphi 0, %s28
      %s45 = sphi 0, %s29
      %s51 = sphi 0, %s53
      %s54 = sphi 0, %s51
      %s55 = sphi 0, %s54
      %s71 = sphi 0, %s55
      %s77 = sphi 0, %s79
      %s80 = sphi 0, %s77
      %s81 = sphi 0, %s80
      %s97 = sphi 0, %s81
      %s103 = sphi 0, %s105
      %s106 = sphi 0, %s103
      %s107 = sphi 0, %s106
      %s123 = sphi 0, %s107
      %s129 = sphi 0, %s131
      %s132 = sphi 0, %s129
      %s133 = sphi 0, %s132
      %s149 = sphi 0, %s133
      %s153 = sphi 0, %s153
      %s155 = sphi 0, %s153
      %s156 = sphi 0, %s155
      %s170 = sphi 0, %s156
      %s176 = sphi 0, %s178
      %s179 = sphi 0, %s176
      %s180 = sphi 0, %s179
      %s196 = sphi 0, %s180
    $region4: #{tpu_custom_call.1} parent=1 // loop_header_branch
      %18 = sbr.rel (%p16) target = $region8
    $region5: #{tpu_custom_call.1} parent=1 // loop_body
      %s20 = ssub.s32 %s15, 1
      %s21 = ssub.s32 %s15, 2
      %s22 = sadd.s32 %s15, 1
      %s23 = ssub.s32 %s15, %s22
      %p24 = scmp.eq.s32.totalorder %s23, 0
      %s26 = sadd.s32 %s25, 1
      %s27 = scalar_select %p24, %s25, %s26
      %p30 = pneg %p24
      %p31 = scmp.eq.s32.totalorder %s15, 2
      %p32 = por %p30, %p31
      %p33 = scmp.ne.s32.totalorder %s25, %s28
      %p34 = scmp.eq.s32.totalorder %s15, 0
      %p35 = por %p33, %p34
      %p36 = scmp.ne.s32.totalorder %s25, %s28
      %p37 = scmp.eq.s32.totalorder %s20, 2
      %p38 = por %p36, %p37
      %p39 = scmp.ne.s32.totalorder %s28, %s29
      %p40 = scmp.eq.s32.totalorder %s20, 0
      %p41 = por %p39, %p40
      %p42 = scmp.ne.s32.totalorder %s28, %s29
      %p43 = scmp.eq.s32.totalorder %s21, 2
      %p44 = por %p42, %p43
      %p46 = scmp.ne.s32.totalorder %s29, %s45
      %p47 = scmp.eq.s32.totalorder %s21, 0
      %p48 = por %p46, %p47
      %s49 = ssub.s32 %s15, %s22
      %p50 = scmp.eq.s32.totalorder %s49, 0
      %s52 = sadd.s32 %s51, 1
      %s53 = scalar_select %p50, %s51, %s52
      %p56 = pneg %p50
      %p57 = scmp.eq.s32.totalorder %s15, 2
      %p58 = por %p56, %p57
      %p59 = scmp.ne.s32.totalorder %s51, %s54
      %p60 = scmp.eq.s32.totalorder %s15, 0
      %p61 = por %p59, %p60
      %p62 = scmp.ne.s32.totalorder %s51, %s54
      %p63 = scmp.eq.s32.totalorder %s20, 2
      %p64 = por %p62, %p63
      %p65 = scmp.ne.s32.totalorder %s54, %s55
      %p66 = scmp.eq.s32.totalorder %s20, 0
      %p67 = por %p65, %p66
      %p68 = scmp.ne.s32.totalorder %s54, %s55
      %p69 = scmp.eq.s32.totalorder %s21, 2
      %p70 = por %p68, %p69
      %p72 = scmp.ne.s32.totalorder %s55, %s71
      %p73 = scmp.eq.s32.totalorder %s21, 0
      %p74 = por %p72, %p73
      %s75 = ssub.s32 %s15, %s22
      %p76 = scmp.eq.s32.totalorder %s75, 0
      %s78 = sadd.s32 %s77, 1
      %s79 = scalar_select %p76, %s77, %s78
      %p82 = pneg %p76
      %p83 = scmp.eq.s32.totalorder %s15, 2
      %p84 = por %p82, %p83
      %p85 = scmp.ne.s32.totalorder %s77, %s80
      %p86 = scmp.eq.s32.totalorder %s15, 0
      %p87 = por %p85, %p86
      %p88 = scmp.ne.s32.totalorder %s77, %s80
      %p89 = scmp.eq.s32.totalorder %s20, 2
      %p90 = por %p88, %p89
      %p91 = scmp.ne.s32.totalorder %s80, %s81
      %p92 = scmp.eq.s32.totalorder %s20, 0
      %p93 = por %p91, %p92
      %p94 = scmp.ne.s32.totalorder %s80, %s81
      %p95 = scmp.eq.s32.totalorder %s21, 2
      %p96 = por %p94, %p95
      %p98 = scmp.ne.s32.totalorder %s81, %s97
      %p99 = scmp.eq.s32.totalorder %s21, 0
      %p100 = por %p98, %p99
      %s101 = ssub.s32 %s15, %s22
      %p102 = scmp.eq.s32.totalorder %s101, 0
      %s104 = sadd.s32 %s103, 1
      %s105 = scalar_select %p102, %s103, %s104
      %p108 = pneg %p102
      %p109 = scmp.eq.s32.totalorder %s15, 2
      %p110 = por %p108, %p109
      %p111 = scmp.ne.s32.totalorder %s103, %s106
      %p112 = scmp.eq.s32.totalorder %s15, 0
      %p113 = por %p111, %p112
      %p114 = scmp.ne.s32.totalorder %s103, %s106
      %p115 = scmp.eq.s32.totalorder %s20, 2
      %p116 = por %p114, %p115
      %p117 = scmp.ne.s32.totalorder %s106, %s107
      %p118 = scmp.eq.s32.totalorder %s20, 0
      %p119 = por %p117, %p118
      %p120 = scmp.ne.s32.totalorder %s106, %s107
      %p121 = scmp.eq.s32.totalorder %s21, 2
      %p122 = por %p120, %p121
      %p124 = scmp.ne.s32.totalorder %s107, %s123
      %p125 = scmp.eq.s32.totalorder %s21, 0
      %p126 = por %p124, %p125
      %s127 = ssub.s32 %s15, %s22
      %p128 = scmp.eq.s32.totalorder %s127, 0
      %s130 = sadd.s32 %s129, 1
      %s131 = scalar_select %p128, %s129, %s130
      %p134 = pneg %p128
      %p135 = scmp.eq.s32.totalorder %s15, 2
      %p136 = por %p134, %p135
      %p137 = scmp.ne.s32.totalorder %s129, %s132
      %p138 = scmp.eq.s32.totalorder %s15, 0
      %p139 = por %p137, %p138
      %p140 = scmp.ne.s32.totalorder %s129, %s132
      %p141 = scmp.eq.s32.totalorder %s20, 2
      %p142 = por %p140, %p141
      %p143 = scmp.ne.s32.totalorder %s132, %s133
      %p144 = scmp.eq.s32.totalorder %s20, 0
      %p145 = por %p143, %p144
      %p146 = scmp.ne.s32.totalorder %s132, %s133
      %p147 = scmp.eq.s32.totalorder %s21, 2
      %p148 = por %p146, %p147
      %p150 = scmp.ne.s32.totalorder %s133, %s149
      %p151 = scmp.eq.s32.totalorder %s21, 0
      %p152 = por %p150, %p151
      %s154 = sadd.s32 %s153, 1
      %p157 = scmp.eq.s32.totalorder %s15, 2
      %p158 = scmp.ne.s32.totalorder %s153, %s155
      %p159 = scmp.eq.s32.totalorder %s15, 0
      %p160 = por %p158, %p159
      %p161 = scmp.ne.s32.totalorder %s153, %s155
      %p162 = scmp.eq.s32.totalorder %s20, 2
      %p163 = por %p161, %p162
      %p164 = scmp.ne.s32.totalorder %s155, %s156
      %p165 = scmp.eq.s32.totalorder %s20, 0
      %p166 = por %p164, %p165
      %p167 = scmp.ne.s32.totalorder %s155, %s156
      %p168 = scmp.eq.s32.totalorder %s21, 2
      %p169 = por %p167, %p168
      %p171 = scmp.ne.s32.totalorder %s156, %s170
      %p172 = scmp.eq.s32.totalorder %s21, 0
      %p173 = por %p171, %p172
      %s174 = ssub.s32 %s15, %s22
      %p175 = scmp.eq.s32.totalorder %s174, 0
      %s177 = sadd.s32 %s176, 1
      %s178 = scalar_select %p175, %s176, %s177
      %p181 = pneg %p175
      %p182 = scmp.eq.s32.totalorder %s15, 2
      %p183 = por %p181, %p182
      %p184 = scmp.ne.s32.totalorder %s176, %s179
      %p185 = scmp.eq.s32.totalorder %s15, 0
      %p186 = por %p184, %p185
      %p187 = scmp.ne.s32.totalorder %s176, %s179
      %p188 = scmp.eq.s32.totalorder %s20, 2
      %p189 = por %p187, %p188
      %p190 = scmp.ne.s32.totalorder %s179, %s180
      %p191 = scmp.eq.s32.totalorder %s20, 0
      %p192 = por %p190, %p191
      %p193 = scmp.ne.s32.totalorder %s179, %s180
      %p194 = scmp.eq.s32.totalorder %s21, 2
      %p195 = por %p193, %p194
      %p197 = scmp.ne.s32.totalorder %s180, %s196
      %p198 = scmp.eq.s32.totalorder %s21, 0
      %p199 = por %p197, %p198
      %p200 = scmp.le.s32.totalorder 1, %s15
      %p201 = scmp.lt.s32.totalorder %s15, 4
      %p202 = pnand %p200, %p201
      %p203 = pneg %p202
      // Predicated region
      $region9: #{tpu_custom_call.1} parent=5 // pred_check
        _
      $region10: #{tpu_custom_call.1} parent=5 // pred_check_branch
        %205 = sbr.rel (%p202) target = $region12
      $region11: #{tpu_custom_call.1} parent=5 // pred_region
        %s206 = ssub.s32 %s15, 1
        // Predicated region
        $region13: #{tpu_custom_call.1} parent=11 // pred_check
          %p207 = pneg %p166
        $region14: #{tpu_custom_call.1} parent=11 // pred_check_branch
          %209 = sbr.rel (%p207) target = $region16
        $region15: #{tpu_custom_call.1} parent=11 // pred_region
          _
        $region16: #{tpu_custom_call.1} parent=11 // pred_fallthru
          _
      $region12: #{tpu_custom_call.1} parent=5 // pred_fallthru
        _
      %p210 = scmp.lt.s32.totalorder %s15, 3
      // Predicated region
      $region17: #{tpu_custom_call.1} parent=5 // pred_check
        %p211 = pneg %p210
      $region18: #{tpu_custom_call.1} parent=5 // pred_check_branch
        %213 = sbr.rel (%p211) target = $region20
      $region19: #{tpu_custom_call.1} parent=5 // pred_region
        // Predicated region
        $region21: #{tpu_custom_call.1} parent=19 // pred_check
          %p214 = pneg %p35
        $region22: #{tpu_custom_call.1} parent=19 // pred_check_branch
          %216 = sbr.rel (%p214) target = $region24
        $region23: #{tpu_custom_call.1} parent=19 // pred_region
          %p217 = scmp.lt.s32.totalorder %s15, 2
          %s218 = scalar_select %p217, %s15, 2
          %s219 = smul.addr %s218, 2
          %s220 = smul.addr %s219, 8
          %s221 = scalar_lea.vmem %s0, %s220
        $region24: #{tpu_custom_call.1} parent=19 // pred_fallthru
          _
        // Predicated region
        $region25: #{tpu_custom_call.1} parent=19 // pred_check
          %p222 = pneg %p61
        $region26: #{tpu_custom_call.1} parent=19 // pred_check_branch
          %224 = sbr.rel (%p222) target = $region28
        $region27: #{tpu_custom_call.1} parent=19 // pred_region
          %p225 = scmp.lt.s32.totalorder %s15, 2
          %s226 = scalar_select %p225, %s15, 2
          %s227 = smul.addr %s226, 4
          %s228 = scalar_lea.vmem %s1, %s227
        $region28: #{tpu_custom_call.1} parent=19 // pred_fallthru
          _
        // Predicated region
        $region29: #{tpu_custom_call.1} parent=19 // pred_check
          %p229 = pneg %p87
        $region30: #{tpu_custom_call.1} parent=19 // pred_check_branch
          %231 = sbr.rel (%p229) target = $region32
        $region31: #{tpu_custom_call.1} parent=19 // pred_region
          %p232 = scmp.lt.s32.totalorder %s15, 2
          %s233 = scalar_select %p232, %s15, 2
          %s234 = smul.addr %s233, 8
          %s235 = scalar_lea.vmem %s2, %s234
        $region32: #{tpu_custom_call.1} parent=19 // pred_fallthru
          _
        // Predicated region
        $region33: #{tpu_custom_call.1} parent=19 // pred_check
          %p236 = pneg %p113
        $region34: #{tpu_custom_call.1} parent=19 // pred_check_branch
          %238 = sbr.rel (%p236) target = $region36
        $region35: #{tpu_custom_call.1} parent=19 // pred_region
          %p239 = scmp.lt.s32.totalorder %s15, 2
          %s240 = scalar_select %p239, %s15, 2
          %s241 = smul.addr %s240, 8
          %s242 = scalar_lea.vmem %s3, %s241
        $region36: #{tpu_custom_call.1} parent=19 // pred_fallthru
          _
        // Predicated region
        $region37: #{tpu_custom_call.1} parent=19 // pred_check
          %p243 = pneg %p139
        $region38: #{tpu_custom_call.1} parent=19 // pred_check_branch
          %245 = sbr.rel (%p243) target = $region40
        $region39: #{tpu_custom_call.1} parent=19 // pred_region
          %p246 = scmp.lt.s32.totalorder %s15, 2
          %s247 = scalar_select %p246, %s15, 2
          %s248 = smul.addr %s247, 8
          %s249 = scalar_lea.vmem %s4, %s248
        $region40: #{tpu_custom_call.1} parent=19 // pred_fallthru
          _
      $region20: #{tpu_custom_call.1} parent=5 // pred_fallthru
        _
      %p250 = scmp.le.s32.totalorder 1, %s15
      %p251 = scmp.lt.s32.totalorder %s15, 4
      %p252 = pnand %p250, %p251
      %p253 = pneg %p252
      // Predicated region
      $region41: #{tpu_custom_call.1} parent=5 // pred_check
        _
      $region42: #{tpu_custom_call.1} parent=5 // pred_check_branch
        %255 = sbr.rel (%p252) target = $region44
      $region43: #{tpu_custom_call.1} parent=5 // pred_region
        %s256 = ssub.s32 %s15, 1
        %p257 = scmp.lt.s32.totalorder %s20, 2
        %s258 = scalar_select %p257, %s20, 2
        %s259 = smul.addr %s258, 2
        %s260 = smul.addr %s259, 8
        %s261 = scalar_lea.vmem %s0, %s260
        %p262 = pneg %p41
        %p263 = pneg %p38
        %p264 = scmp.lt.s32.totalorder %s20, 2
        %s265 = scalar_select %p264, %s20, 2
        %s266 = smul.addr %s265, 4
        %s267 = scalar_lea.vmem %s1, %s266
        %p268 = pneg %p67
        %p269 = pneg %p64
        %p270 = scmp.lt.s32.totalorder %s20, 2
        %s271 = scalar_select %p270, %s20, 2
        %s272 = smul.addr %s271, 8
        %s273 = scalar_lea.vmem %s2, %s272
        %p274 = pneg %p93
        %p275 = pneg %p90
        %p276 = scmp.lt.s32.totalorder %s20, 2
        %s277 = scalar_select %p276, %s20, 2
        %s278 = smul.addr %s277, 8
        %s279 = scalar_lea.vmem %s3, %s278
        %p280 = pneg %p119
        %p281 = pneg %p116
        %p282 = scmp.lt.s32.totalorder %s20, 2
        %s283 = scalar_select %p282, %s20, 2
        %s284 = smul.addr %s283, 8
        %s285 = scalar_lea.vmem %s4, %s284
        %p286 = pneg %p145
        %p287 = pneg %p142
        %p288 = pneg %p166
        %p289 = pneg %p163
        %p290 = pneg %p192
        %p291 = pneg %p189
        %s292 = sand.u32 %s179, 1
        %s293 = scalar_lea.sflag [#allocation4], %s292
        %s294 = sand.u32 %s179, 1
        %s295 = smul.addr %s294, 16
        %s296 = scalar_lea.vmem [#allocation3], %s295
        %p297 = scmp.lt.s32.totalorder %s20, 2
        %s298 = scalar_select %p297, %s20, 2
        %s299 = smul.addr %s298, 2
        %s300 = smul.addr %s299, 8
        %s301 = scalar_lea.vmem %s0, %s300
        %p302 = scmp.lt.s32.totalorder %s20, 2
        %s303 = scalar_select %p302, %s20, 2
        %s304 = smul.addr %s303, 4
        %s305 = scalar_lea.vmem %s1, %s304
        %p306 = scmp.lt.s32.totalorder %s20, 2
        %s307 = scalar_select %p306, %s20, 2
        %s308 = smul.addr %s307, 8
        %s309 = scalar_lea.vmem %s2, %s308
        %p310 = scmp.lt.s32.totalorder %s20, 2
        %s311 = scalar_select %p310, %s20, 2
        %s312 = smul.addr %s311, 8
        %s313 = scalar_lea.vmem %s3, %s312
        %p314 = scmp.lt.s32.totalorder %s20, 2
        %s315 = scalar_select %p314, %s20, 2
        %s316 = smul.addr %s315, 8
        %s317 = scalar_lea.vmem %s4, %s316
        %p319 = scmp.eq.s32.totalorder %s20, 0
        // Predicated region
        $region45: #{tpu_custom_call.1} parent=43 // pred_check
          %p320 = pneg %p319
        $region46: #{tpu_custom_call.1} parent=43 // pred_check_branch
          %322 = sbr.rel (%p320) target = $region48
        $region47: #{tpu_custom_call.1} parent=43 // pred_region
          %v323 = vld [vmem:[%s301] sm:$0xff]
          %v324 = vld [vmem:[%s301 + $0x8] sm:$0xff]
          %325 = vst [vmem:[#allocation2] sm:$0xff] %v323
          %326 = vst [vmem:[#allocation2 + $0x8] sm:$0xff] %v324
        $region48: #{tpu_custom_call.1} parent=43 // pred_fallthru
          _
        %p327 = scmp.ne.s32.totalorder %s20, 0
        // Predicated region
        $region49: #{tpu_custom_call.1} parent=43 // pred_check
          %p328 = pneg %p327
        $region50: #{tpu_custom_call.1} parent=43 // pred_check_branch
          %330 = sbr.rel (%p328) target = $region52
        $region51: #{tpu_custom_call.1} parent=43 // pred_region
          %v331 = vld [vmem:[#allocation2] sm:$0xff]
          %v332 = vld [vmem:[#allocation2 + $0x8] sm:$0xff]
          %v333 = vld [vmem:[%s301] sm:$0xff]
          %v334 = vld [vmem:[%s301 + $0x8] sm:$0xff]
          %v335 = vadd.f32 %v331, %v333
          %v336 = vadd.f32 %v332, %v334
          %337 = vst [vmem:[#allocation2] sm:$0xff] %v335
          %338 = vst [vmem:[#allocation2 + $0x8] sm:$0xff] %v336
        $region52: #{tpu_custom_call.1} parent=43 // pred_fallthru
          _
        %v339 = vld [vmem:[#allocation2] sm:$0xff]
        %v340 = vld [vmem:[#allocation2 + $0x8] sm:$0xff]
        %341 = vrot.lane.b32.xlu0 %v339, 1
        %v342 = vpop.permute.xlu0 %341
        %343 = vrot.lane.b32.xlu0 %v340, 1
        %v344 = vpop.permute.xlu0 %343
        %v345 = vlaneseq
        %v346 = vand.u32 %v345, 127
        %vm347 = vcmp.lt.s32.totalorder %v346, 1
        %v348 = vsel %vm347, %v342, %v344
        %v349 = vsel %vm347, %v344, %v342
        %350 = vrot.lane.b32.xlu0 %v339, 127
        %v351 = vpop.permute.xlu0 %350
        %352 = vrot.lane.b32.xlu0 %v340, 127
        %v353 = vpop.permute.xlu0 %352
        %vm354 = vcmp.lt.s32.totalorder %v346, 127
        %v355 = vsel %vm354, %v351, %v353
        %v356 = vsel %vm354, %v353, %v351
        %v357 = vpack.c.bf16 %v339, %v349
        %v358 = vpack.c.bf16 %v340, %v348
        %v359 = vpack.c.bf16 %v355, %v355
        %v360 = vpack.c.bf16 %v356, %v356
        %v361 = vld [vmem:[%s305] sm:$0xf]
        %v362 = vld [vmem:[%s309] sm:$0xff]
        %364 = vset.pattern.permute.xlu0 0
        %365 = vperm.xlu0 %364, %v362
        %v366 = vpop.permute.xlu0 %365
        %vm368 = vcmask 195584
        %v370 = vsel %vm368, %v361, 0
        %vm372 = vcmask 1043456
        %v374 = vsel %vm372, %v359, 0
        %v377 = vsel %vm372, %v360, 0
        %379 = vmatpush.bf16.msra.mxu0 0
        %380 = vmatpush.bf16.msra.mxu0 0
        %381 = vmatpush.bf16.msra.mxu0 0
        %382 = vmatpush.bf16.msra.mxu0 0
        %383 = vmatpush.bf16.msra.mxu0 0
        %384 = vmatpush.bf16.msra.mxu0 0
        %385 = vmatpush.bf16.msra.mxu0 %v374
        %386 = vmatpush.bf16.msra.mxu0 %v357
        %387 = vmatmul.bf16.gmra.mxu0 %v370
        %v388 = vpop.f32.mrf.mxu0
        %v389 = vadd.f32 %v366, %v388
        %v390 = vpop.f32.mrf.mxu0
        %391 = vdwg.mxu0
        %392 = vmatpush.bf16.msra.mxu0 0
        %393 = vmatpush.bf16.msra.mxu0 0
        %394 = vmatpush.bf16.msra.mxu0 0
        %395 = vmatpush.bf16.msra.mxu0 0
        %396 = vmatpush.bf16.msra.mxu0 0
        %397 = vmatpush.bf16.msra.mxu0 0
        %398 = vmatpush.bf16.msra.mxu0 %v377
        %399 = vmatpush.bf16.msra.mxu0 %v358
        %400 = vmatmul.bf16.gmra.mxu0 %v370
        %v401 = vpop.f32.mrf.mxu0
        %v402 = vadd.f32 %v366, %v401
        %v403 = vpop.f32.mrf.mxu0
        %404 = vdwg.mxu0
        %v405 = vmax.f32 %v389, 0.0
        %v406 = vmax.f32 %v402, 0.0
        %v407 = vld [vmem:[%s5] sm:$0x3]
        %v409 = vperm.slane %v407, 0
        %v410 = vperm.slane %v407, 1
        %v413 = vmul.f32 %v405, %v409
        %v414 = vmul.f32 %v406, %v410
        %v415 = vadd.f32 %v413, %v414
        %416 = vadd.xlane.f32.xlu0 %v415
        %v417 = vpop.xlane.xlu0 %416
        %v418 = vmul.f32 %v413, %v413
        %v419 = vmul.f32 %v414, %v414
        %v420 = vadd.f32 %v418, %v419
        %421 = vadd.xlane.f32.xlu0 %v420
        %v422 = vpop.xlane.xlu0 %421
        %v423 = vmul.f32 %v417, 0.03125
        %v424 = vmul.f32 %v422, 0.03125
        %v425 = vmul.f32 %v423, %v423
        %v426 = vsub.f32 %v424, %v425
        %v427 = vsub.f32 %v405, %v423
        %v428 = vsub.f32 %v406, %v423
        %v429 = vadd.f32 %v426, 1e-05
        %v430 = vrsqrt.pop %v429
        %v431 = vmul.f32 %v430, %v429
        %v432 = vmul.f32 %v431, %v430
        %v433 = vmul.f32 0.5, %v432
        %v434 = vsub.f32 1.5, %v433
        %v435 = vmul.f32 %v430, %v434
        %vm436 = vweird.f32 %v429
        %vm437 = vweird.f32 %v430
        %vm438 = vmor %vm436, %vm437
        %v439 = vsel %vm438, %v430, %v435
        %v440 = vmul.f32 %v427, %v439
        %v441 = vmul.f32 %v428, %v439
        %v442 = vld [vmem:[%s313] sm:$0xff]
        %444 = vset.pattern.permute.xlu0 0
        %445 = vperm.xlu0 %444, %v442
        %v446 = vpop.permute.xlu0 %445
        %v448 = vmul.f32 %v440, %v446
        %v449 = vmul.f32 %v441, %v446
        %v450 = vld [vmem:[%s317] sm:$0xff]
        %452 = vset.pattern.permute.xlu0 0
        %453 = vperm.xlu0 %452, %v450
        %v454 = vpop.permute.xlu0 %453
        %v456 = vadd.f32 %v448, %v454
        %v457 = vadd.f32 %v449, %v454
        %v458 = vmul.f32 %v456, %v409
        %v459 = vmul.f32 %v457, %v410
        %460 = vst [vmem:[%s296] sm:$0xff] %v458
        %461 = vst [vmem:[%s296 + $0x8] sm:$0xff] %v459
        %462 = vst [vmem:[#allocation2] sm:$0xff] %v458
        %463 = vst [vmem:[#allocation2 + $0x8] sm:$0xff] %v459
        %s464 = sand.u32 %s179, 1
        %s465 = scalar_lea.sflag [#allocation4], %s464
        %s466 = sand.u32 %s179, 1
        %s467 = smul.addr %s466, 16
        %s468 = scalar_lea.vmem [#allocation3], %s467
        // Predicated region
        $region53: #{tpu_custom_call.1} parent=43 // pred_check
          %p469 = pneg %p189
        $region54: #{tpu_custom_call.1} parent=43 // pred_check_branch
          %471 = sbr.rel (%p469) target = $region56
        $region55: #{tpu_custom_call.1} parent=43 // pred_region
          %473 = vsyncadd %s465, 0
          %s474 = smul.addr %s20, 2
          %s475 = smul.addr %s474, 8
          %s476 = scalar_lea.hbm %s6, %s475
          %s478 = sshll.u32 %s468, 4
          %s479 = int_to_ptr.vmem [resolvable:$true] %s478
          %s480 = sshll.u32 %s476, 4
          %s481 = int_to_ptr.hbm [resolvable:$true] %s480
          %483 = dma.vmem_to_hbm [thread:$0]  %s479, 256, %s481, %s465
        $region56: #{tpu_custom_call.1} parent=43 // pred_fallthru
          _
      $region44: #{tpu_custom_call.1} parent=5 // pred_fallthru
        _
      %p484 = scmp.le.s32.totalorder 2, %s15
      // Predicated region
      $region57: #{tpu_custom_call.1} parent=5 // pred_check
        %p485 = pneg %p484
      $region58: #{tpu_custom_call.1} parent=5 // pred_check_branch
        %487 = sbr.rel (%p485) target = $region60
      $region59: #{tpu_custom_call.1} parent=5 // pred_region
        %s488 = ssub.s32 %s15, 2
        // Predicated region
        $region61: #{tpu_custom_call.1} parent=59 // pred_check
          %p489 = pneg %p195
        $region62: #{tpu_custom_call.1} parent=59 // pred_check_branch
          %491 = sbr.rel (%p489) target = $region64
        $region63: #{tpu_custom_call.1} parent=59 // pred_region
          %s492 = sand.u32 %s180, 1
          %s493 = scalar_lea.sflag [#allocation4], %s492
          %s494 = sand.u32 %s180, 1
          %s495 = smul.addr %s494, 16
          %s496 = scalar_lea.vmem [#allocation3], %s495
          %498 = dma.done %s493, 256
        $region64: #{tpu_custom_call.1} parent=59 // pred_fallthru
          _
      $region60: #{tpu_custom_call.1} parent=5 // pred_fallthru
        _
    $region6: #{tpu_custom_call.1} parent=1 // loop_footer
      %s19 = sadd.s32 1, %s15
    $region7: #{tpu_custom_call.1} parent=1 // loop_footer_branch
      %14 = sbr.rel target = $region3
    $region8: #{tpu_custom_call.1} parent=1 // loop_exit
      _
    %499 = vsyncpa [#allocation4], 1
    %s500 = scalar_lea.sflag [#allocation4], 1
    %501 = vsyncpa %s500, 1

</llo_original>
